<compile_context>
chip_gen: v5e
topology: v5e:2x2
jax: 0.10.0
libtpu: 0.0.40
codegen_flags: <defaults>
</compile_context>

<pallas_src>
import functools

import jax
import jax.numpy as jnp
from jax import lax
from jax.experimental import pallas as pl
from jax.experimental.pallas import tpu as pltpu


def _round_up(x, m):
    return ((x + m - 1) // m) * m


def _scores_kernel(x_ref, w1_ref, b1_ref, w2_ref, out_ref, h_ref):
    """logp=False: raw scores, single sweep over the vocab tiles."""
    j = pl.program_id(1)

    @pl.when(j == 0)
    def _():
        h = jnp.dot(x_ref[...], w1_ref[...], preferred_element_type=jnp.float32)
        h = h + b1_ref[...].astype(jnp.float32)
        h_ref[...] = jnp.maximum(h, 0.0).astype(h_ref.dtype)

    out_ref[...] = jnp.dot(h_ref[...], w2_ref[...],
                           preferred_element_type=jnp.float32).astype(out_ref.dtype)


def _logp_kernel(x_ref, w1_ref, b1_ref, w2_ref, out_ref,
                 h_ref, slab_ref, m_ref, l_ref, *,
                 vocab_size, tile_v, mask_last, cache_logits, exp_bf16):
    # grid = (row_tiles, 2 sweeps, vocab_tiles)
    p = pl.program_id(1)   # 0: stats sweep, 1: write sweep
    j = pl.program_id(2)   # vocab tile index
    nv = pl.num_programs(2)

    if cache_logits:
        off = j * tile_v
        if tile_v % 128 == 0:
            off = pl.multiple_of(off, 128)

    # Once per row tile: bridge = relu(x @ W1 + b1) cached in VMEM, stats init.
    @pl.when(jnp.logical_and(p == 0, j == 0))
    def _():
        h = jnp.dot(x_ref[...], w1_ref[...], preferred_element_type=jnp.float32)
        h = h + b1_ref[...].astype(jnp.float32)
        h_ref[...] = jnp.maximum(h, 0.0).astype(h_ref.dtype)
        m_ref[...] = jnp.full(m_ref.shape, -jnp.inf, dtype=m_ref.dtype)
        l_ref[...] = jnp.zeros(l_ref.shape, dtype=l_ref.dtype)

    # ---- sweep 0: logits tile (MXU), optional VMEM cache, online stats ----
    @pl.when(p == 0)
    def _():
        logits = jnp.dot(h_ref[...], w2_ref[...],
                         preferred_element_type=jnp.float32)
        if cache_logits:
            slab_ref[:, pl.ds(off, tile_v)] = logits

        def update(s):
            m_prev = m_ref[...]
            m_new = jnp.maximum(m_prev, jnp.max(s, axis=-1, keepdims=True))
            sm = s - m_new
            if exp_bf16:
                pe = jnp.exp(sm.astype(jnp.bfloat16)).astype(jnp.float32)
            else:
                pe = jnp.exp(sm)
            l_ref[...] = (l_ref[...] * jnp.exp(m_prev - m_new)
                          + jnp.sum(pe, axis=-1, keepdims=True))
            m_ref[...] = m_new

        if mask_last:
            # only the last vocab tile is partial -> pay the iota/select there
            @pl.when(j == nv - 1)
            def _():
                col = j * tile_v + lax.broadcasted_iota(jnp.int32, logits.shape, 1)
                update(jnp.where(col < vocab_size, logits, -jnp.inf))

            @pl.when(j < nv - 1)
            def _():
                update(logits)
        else:
            update(logits)

    # ---- sweep 1: fold stats -> lse once, stream normalized tiles out ----
    @pl.when(jnp.logical_and(p == 1, j == 0))
    def _():
        l_ref[...] = m_ref[...] + jnp.log(l_ref[...])

    @pl.when(p == 1)
    def _():
        if cache_logits:
            logits = slab_ref[:, pl.ds(off, tile_v)]
        else:
            logits = jnp.dot(h_ref[...], w2_ref[...],
                             preferred_element_type=jnp.float32)
        out_ref[...] = (logits - l_ref[...]).astype(out_ref.dtype)


def bridge_softmax(hidden, w1, b1, w2, *, logp=True, tile_m=None, tile_v=None,
                   out_dtype=None, single_pass=None, exp_in_bf16=None):
    """hidden: (..., input_size); w1: (input, hidden); b1: (hidden,);
    w2: (hidden, vocab).  Returns (N, vocab) log-probs (logp=True) or raw
    scores.  out_dtype defaults to hidden.dtype (pass jnp.float32 for a
    full-precision log-prob output on the bf16 path)."""
    input_size, hidden_size = w1.shape
    vocab_size = w2.shape[1]
    assert hidden.shape[-1] == input_size

    x = hidden.reshape(-1, input_size)
    n_rows = x.shape[0]
    if out_dtype is None:
        out_dtype = hidden.dtype

    # ------------------ per-generation VMEM / tile budgets ------------------
    try:
        vmem_cap = int(pltpu.get_tpu_info().vmem_capacity_bytes)
    except Exception:
        vmem_cap = 64 * 1024 * 1024            # conservative (v7x-sized)
    if vmem_cap >= 96 * 1024 * 1024:           # v5e / v6e: 128 MiB physical
        gen_ceiling = 100 * 1024 * 1024
        default_tm, default_tv = 512, 1024
    else:                                      # v7x-class: 64 MiB per TC
        gen_ceiling = 52 * 1024 * 1024
        default_tm, default_tv = 512, 512
    vmem_ceiling = max(8 * 1024 * 1024, min(gen_ceiling, int(vmem_cap * 0.85)))

    if tile_m is None:
        tile_m = default_tm
    if tile_v is None:
        tile_v = default_tv

    # Clamp tiles to the problem size while keeping block-tiling legality:
    # row tile a multiple of 16 (fp32 & bf16), vocab tile a multiple of 128
    # (or the full vocab when it is < 128).
    tile_m = min(tile_m, _round_up(n_rows, 16))
    if vocab_size < 128:
        tile_v = vocab_size
    else:
        tile_v = min(tile_v, (vocab_size // 128) * 128)

    isz = jnp.dtype(x.dtype).itemsize
    wsz = jnp.dtype(w2.dtype).itemsize
    osz = jnp.dtype(out_dtype).itemsize

    def vmem_estimate(tm, tv, slab_cols):
        return (2 * tm * input_size * isz               # x blocks (dbl-buffered)
                + 2 * input_size * hidden_size * wsz    # W1 (grid-invariant)
                + 2 * 8 * 128 * wsz                     # b1 (layout padded)
                + 2 * hidden_size * tv * wsz            # W2 tiles
                + 2 * tm * tv * osz                     # output tiles
                + tm * hidden_size * wsz                # h cache
                + tm * slab_cols * 4                    # f32 logits slab
                + 2 * tm * 128 * 4)                     # m / l stats (padded)

    budget = int(vmem_ceiling * 0.9)
    b1_2d = b1.reshape(1, hidden_size)

    # ----------------------------- logp = False -----------------------------
    if not logp:
        while vmem_estimate(tile_m, tile_v, 0) > budget and tile_v > 256:
            tile_v //= 2
        while vmem_estimate(tile_m, tile_v, 0) > budget and tile_m > 128:
            tile_m = max(16, _round_up(tile_m // 2, 16))

        grid = (pl.cdiv(n_rows, tile_m), pl.cdiv(vocab_size, tile_v))
        est = vmem_estimate(tile_m, tile_v, 0)
        vmem_limit = int(min(max(int(1.25 * est), 32 * 1024 * 1024), vmem_ceiling))

        return pl.pallas_call(
            _scores_kernel,
            out_shape=jax.ShapeDtypeStruct((n_rows, vocab_size), out_dtype),
            grid_spec=pltpu.PrefetchScalarGridSpec(
                num_scalar_prefetch=0,
                grid=grid,
                in_specs=[
                    pl.BlockSpec((tile_m, input_size), lambda i, j: (i, 0)),
                    pl.BlockSpec((input_size, hidden_size), lambda i, j: (0, 0)),
                    pl.BlockSpec((1, hidden_size), lambda i, j: (0, 0)),
                    pl.BlockSpec((hidden_size, tile_v), lambda i, j: (0, j)),
                ],
                out_specs=pl.BlockSpec((tile_m, tile_v), lambda i, j: (i, j)),
                scratch_shapes=[pltpu.VMEM((tile_m, hidden_size), w2.dtype)],
            ),
            compiler_params=pltpu.CompilerParams(
                dimension_semantics=("parallel", "arbitrary"),
                vmem_limit_bytes=vmem_limit,
            ),
        )(x, w1, b1_2d, w2)

    # ----------------------------- logp = True ------------------------------
    n_vt = pl.cdiv(vocab_size, tile_v)
    slab_cols = n_vt * tile_v                  # padded vocab width of the slab

    if single_pass is None:
        cache_logits = vmem_estimate(tile_m, tile_v, slab_cols) <= budget
    else:
        cache_logits = bool(single_pass)

    if not cache_logits:
        slab_cols = 128                        # dummy allocation, never touched
        while vmem_estimate(tile_m, tile_v, slab_cols) > budget and tile_v > 512:
            tile_v //= 2
        while vmem_estimate(tile_m, tile_v, slab_cols) > budget and tile_m > 128:
            tile_m = max(16, _round_up(tile_m // 2, 16))
        n_vt = pl.cdiv(vocab_size, tile_v)

    mask_last = (vocab_size % tile_v) != 0
    if exp_in_bf16 is None:
        # EUP relief for small hidden sizes on the bf16 path; the row-sum
        # accumulation stays in f32.
        exp_in_bf16 = (x.dtype == jnp.bfloat16) and hidden_size < 256

    est = vmem_estimate(tile_m, tile_v, slab_cols)
    vmem_limit = int(min(max(int(1.25 * est), 32 * 1024 * 1024), vmem_ceiling))

    n_row_tiles = pl.cdiv(n_rows, tile_m)
    grid = (n_row_tiles, 2, n_vt)

    if cache_logits:
        # Sweep 1 never reads W2: pin its block index to the last tile so W2
        # is streamed from HBM exactly once per row tile.
        w2_index = lambda i, p, j: (0, j * (1 - p) + (n_vt - 1) * p)
    else:
        w2_index = lambda i, p, j: (0, j)

    kernel = functools.partial(
        _logp_kernel, vocab_size=vocab_size, tile_v=tile_v,
        mask_last=mask_last, cache_logits=cache_logits, exp_bf16=exp_in_bf16)

    return pl.pallas_call(
        kernel,
        out_shape=jax.ShapeDtypeStruct((n_rows, vocab_size), out_dtype),
        grid_spec=pltpu.PrefetchScalarGridSpec(
            num_scalar_prefetch=0,
            grid=grid,
            in_specs=[
                pl.BlockSpec((tile_m, input_size), lambda i, p, j: (i, 0)),
                pl.BlockSpec((input_size, hidden_size), lambda i, p, j: (0, 0)),
                pl.BlockSpec((1, hidden_size), lambda i, p, j: (0, 0)),
                pl.BlockSpec((hidden_size, tile_v), w2_index),
            ],
            # constant block during sweep 0 (never written), (i, j) during
            # sweep 1 -> each output block is written back to HBM exactly once.
            out_specs=pl.BlockSpec((tile_m, tile_v), lambda i, p, j: (i, j * p)),
            scratch_shapes=[
                pltpu.VMEM((tile_m, hidden_size), w2.dtype),   # bridge h cache
                pltpu.VMEM((tile_m, slab_cols), jnp.float32),  # logits slab
                pltpu.VMEM((tile_m, 1), jnp.float32),          # running max
                pltpu.VMEM((tile_m, 1), jnp.float32),          # running sumexp -> lse
            ],
        ),
        compiler_params=pltpu.CompilerParams(
            dimension_semantics=("parallel", "arbitrary", "arbitrary"),
            vmem_limit_bytes=vmem_limit,
        ),
    )(x, w1, b1_2d, w2)


def bridge_softmax_ref(hidden, w1, b1, w2, logp=True):
    x = hidden.reshape(-1, w1.shape[0]).astype(jnp.float32)
    h = jnp.maximum(x @ w1.astype(jnp.float32) + b1.astype(jnp.float32)[None, :], 0.0)
    s = h @ w2.astype(jnp.float32)
    return jax.nn.log_softmax(s, axis=-1) if logp else s


if __name__ == "__main__":
    # module hyper-params (small, synthetic)
    batch, seq = 2, 8
    input_size = 32
    hidden_size = 32
    vocab_size = 128

    key = jax.random.PRNGKey(0)
    k_h, k_w1, k_b1, k_w2 = jax.random.split(key, 4)

    hidden = jax.random.normal(k_h, (batch, seq, input_size), dtype=jnp.float32)
    w1 = jax.random.normal(k_w1, (input_size, hidden_size), jnp.float32) * (1.0 / input_size ** 0.5)
    b1 = jax.random.normal(k_b1, (hidden_size,), jnp.float32) * 0.01
    w2 = jax.random.normal(k_w2, (hidden_size, vocab_size), jnp.float32) * (1.0 / hidden_size ** 0.5)

    ref_logp = bridge_softmax_ref(hidden, w1, b1, w2, logp=True)
    ref_score = bridge_softmax_ref(hidden, w1, b1, w2, logp=False)

    # fp32, log-probs -- fast path (logits cached in VMEM, single W2 sweep)
    out = jax.block_until_ready(bridge_softmax(hidden, w1, b1, w2, logp=True))
    assert out.shape == (batch * seq, vocab_size)
    assert jnp.allclose(out, ref_logp, atol=1e-4, rtol=1e-4)

    # fp32, log-probs -- forced two-pass (large-vocab fallback) code path
    out2 = jax.block_until_ready(
        bridge_softmax(hidden, w1, b1, w2, logp=True, single_pass=False))
    assert jnp.allclose(out2, ref_logp, atol=1e-4, rtol=1e-4)

    # fp32, raw scores (logp=False path)
    score = jax.block_until_ready(bridge_softmax(hidden, w1, b1, w2, logp=False))
    assert jnp.allclose(score, ref_score, atol=1e-4, rtol=1e-4)

    # partial tiles: vocab % 128 != 0 and n_rows % tile_m != 0 exercise the
    # last-tile -inf masking and Pallas OOB writeback masking on hardware
    v2, n2 = 200, 20
    k_h2, k_w2b = jax.random.split(k_h)
    hidden2 = jax.random.normal(k_h2, (n2, input_size), dtype=jnp.float32)
    w2b = jax.random.normal(k_w2b, (hidden_size, v2), jnp.float32) * (1.0 / hidden_size ** 0.5)
    ref2 = bridge_softmax_ref(hidden2, w1, b1, w2b, logp=True)
    out3 = jax.block_until_ready(bridge_softmax(hidden2, w1, b1, w2b, logp=True))
    assert out3.shape == (n2, v2)
    assert jnp.allclose(out3, ref2, atol=1e-4, rtol=1e-4)

    # bf16 activations/weights/output (MXU-native path), looser tolerance
    out_bf16 = jax.block_until_ready(bridge_softmax(
        hidden.astype(jnp.bfloat16), w1.astype(jnp.bfloat16),
        b1.astype(jnp.bfloat16), w2.astype(jnp.bfloat16), logp=True))
    assert out_bf16.dtype == jnp.bfloat16
    assert jnp.allclose(out_bf16.astype(jnp.float32), ref_logp, atol=1e-1, rtol=1e-1)

    print("KERNEL_OK")
</pallas_src>

<mosaic_0001>
module attributes {stable_mosaic.version = 11 : i64} {
  func.func @_logp_kernel(%arg0: i32, %arg1: i32, %arg2: i32, %arg3: memref<16x32xf32, #tpu.memory_space<vmem>>, %arg4: memref<32x32xf32, #tpu.memory_space<vmem>>, %arg5: memref<1x32xf32, #tpu.memory_space<vmem>>, %arg6: memref<32x128xf32, #tpu.memory_space<vmem>>, %arg7: memref<16x128xf32, #tpu.memory_space<vmem>>, %arg8: memref<16x32xf32, #tpu.memory_space<vmem>>, %arg9: memref<16x128xf32, #tpu.memory_space<vmem>>, %arg10: memref<16x1xf32, #tpu.memory_space<vmem>>, %arg11: memref<16x1xf32, #tpu.memory_space<vmem>>) attributes {dimension_semantics = [#tpu.dimension_semantics<parallel>, #tpu.dimension_semantics<arbitrary>, #tpu.dimension_semantics<arbitrary>], iteration_bounds = array<i64: 1, 2, 1>, scalar_prefetch = 0 : i64, scratch_operands = 4 : i64, tpu.core_type = #tpu.core_type<tc>, window_params = [{transform_indices = @transform_0, window_bounds = array<i64: 16, 32>}, {pipeline_mode = #tpu.pipeline_mode<synchronous>, transform_indices = @transform_1, window_bounds = array<i64: 32, 32>}, {pipeline_mode = #tpu.pipeline_mode<synchronous>, transform_indices = @transform_2, window_bounds = array<i64: 1, 32>}, {transform_indices = @transform_3, window_bounds = array<i64: 32, 128>}, {transform_indices = @transform_4, window_bounds = array<i64: 16, 128>}]} {
    %c128_i32 = arith.constant 128 : i32
    %0 = arith.muli %arg2, %c128_i32 : i32
    %1 = tpu.assume_multiple %0, 128 : i32
    %c0_i32 = arith.constant 0 : i32
    %2 = arith.cmpi eq, %arg1, %c0_i32 : i32
    %c0_i32_0 = arith.constant 0 : i32
    %3 = arith.cmpi eq, %arg2, %c0_i32_0 : i32
    %4 = arith.andi %2, %3 : i1
    %5 = arith.extui %4 : i1 to i32
    %c0_i32_1 = arith.constant 0 : i32
    %6 = arith.cmpi ne, %5, %c0_i32_1 : i32
    scf.if %6 {
      %c0 = arith.constant 0 : index
      %c0_8 = arith.constant 0 : index
      %18 = vector.load %arg3[%c0, %c0_8] : memref<16x32xf32, #tpu.memory_space<vmem>>, vector<16x32xf32>
      %c0_9 = arith.constant 0 : index
      %c0_10 = arith.constant 0 : index
      %19 = vector.load %arg4[%c0_9, %c0_10] : memref<32x32xf32, #tpu.memory_space<vmem>>, vector<32x32xf32>
      %cst = arith.constant dense<0.000000e+00> : vector<16x32xf32>
      %20 = tpu.matmul %18, %19, %cst {dimension_numbers = #tpu.dot_dimension_numbers<[1], [0], [0], [1], [0, 0, 1, 1], [], []>} : vector<16x32xf32>, vector<32x32xf32>, vector<16x32xf32> -> vector<16x32xf32>
      %c0_11 = arith.constant 0 : index
      %c0_12 = arith.constant 0 : index
      %21 = vector.load %arg5[%c0_11, %c0_12] : memref<1x32xf32, #tpu.memory_space<vmem>>, vector<1x32xf32>
      %22 = vector.broadcast %21 : vector<1x32xf32> to vector<16x32xf32>
      %23 = arith.addf %20, %22 : vector<16x32xf32>
      %cst_13 = arith.constant 0.000000e+00 : f32
      %24 = vector.broadcast %cst_13 : f32 to vector<16x32xf32>
      %25 = arith.maximumf %23, %24 : vector<16x32xf32>
      %c0_14 = arith.constant 0 : index
      %c0_15 = arith.constant 0 : index
      %26 = vector.load %arg8[%c0_14, %c0_15] : memref<16x32xf32, #tpu.memory_space<vmem>>, vector<16x32xf32>
      tpu.vector_store %arg8[%c0_14, %c0_15], %25 {strides = array<i32>} : memref<16x32xf32, #tpu.memory_space<vmem>>, vector<16x32xf32>,
      %cst_16 = arith.constant 0xFF800000 : f32
      %27 = vector.broadcast %cst_16 : f32 to vector<16x1xf32>
      %c0_17 = arith.constant 0 : index
      %c0_18 = arith.constant 0 : index
      %28 = vector.load %arg10[%c0_17, %c0_18] : memref<16x1xf32, #tpu.memory_space<vmem>>, vector<16x1xf32>
      tpu.vector_store %arg10[%c0_17, %c0_18], %27 {strides = array<i32>} : memref<16x1xf32, #tpu.memory_space<vmem>>, vector<16x1xf32>,
      %cst_19 = arith.constant 0.000000e+00 : f32
      %29 = vector.broadcast %cst_19 : f32 to vector<16x1xf32>
      %c0_20 = arith.constant 0 : index
      %c0_21 = arith.constant 0 : index
      %30 = vector.load %arg11[%c0_20, %c0_21] : memref<16x1xf32, #tpu.memory_space<vmem>>, vector<16x1xf32>
      tpu.vector_store %arg11[%c0_20, %c0_21], %29 {strides = array<i32>} : memref<16x1xf32, #tpu.memory_space<vmem>>, vector<16x1xf32>,
    } else {
    }
    %c0_i32_2 = arith.constant 0 : i32
    %7 = arith.cmpi eq, %arg1, %c0_i32_2 : i32
    %8 = arith.extui %7 : i1 to i32
    %c0_i32_3 = arith.constant 0 : i32
    %9 = arith.cmpi ne, %8, %c0_i32_3 : i32
    scf.if %9 {
      %c0 = arith.constant 0 : index
      %c0_8 = arith.constant 0 : index
      %18 = vector.load %arg8[%c0, %c0_8] : memref<16x32xf32, #tpu.memory_space<vmem>>, vector<16x32xf32>
      %c0_9 = arith.constant 0 : index
      %c0_10 = arith.constant 0 : index
      %19 = vector.load %arg6[%c0_9, %c0_10] : memref<32x128xf32, #tpu.memory_space<vmem>>, vector<32x128xf32>
      %cst = arith.constant dense<0.000000e+00> : vector<16x128xf32>
      %20 = tpu.matmul %18, %19, %cst {dimension_numbers = #tpu.dot_dimension_numbers<[1], [0], [0], [1], [0, 0, 1, 1], [], []>} : vector<16x32xf32>, vector<32x128xf32>, vector<16x128xf32> -> vector<16x128xf32>
      %c0_11 = arith.constant 0 : index
      %21 = arith.index_cast %1 : i32 to index
      %22 = vector.load %arg9[%c0_11, %21] : memref<16x128xf32, #tpu.memory_space<vmem>>, vector<16x128xf32>
      tpu.vector_store %arg9[%c0_11, %21], %20 {strides = array<i32>} : memref<16x128xf32, #tpu.memory_space<vmem>>, vector<16x128xf32>,
      %c0_12 = arith.constant 0 : index
      %c0_13 = arith.constant 0 : index
      %23 = vector.load %arg10[%c0_12, %c0_13] : memref<16x1xf32, #tpu.memory_space<vmem>>, vector<16x1xf32>
      %cst_14 = arith.constant dense<0xFF800000> : vector<16xf32>
      %24 = vector.multi_reduction <maximumf>, %20, %cst_14 [1] : vector<16x128xf32> to vector<16xf32>
      %25 = vector.shape_cast %24 : vector<16xf32> to vector<16x1xf32>
      %26 = arith.maximumf %23, %25 : vector<16x1xf32>
      %27 = vector.broadcast %26 : vector<16x1xf32> to vector<16x128xf32>
      %28 = arith.subf %20, %27 : vector<16x128xf32>
      %29 = math.exp %28 : vector<16x128xf32>
      %c0_15 = arith.constant 0 : index
      %c0_16 = arith.constant 0 : index
      %30 = vector.load %arg11[%c0_15, %c0_16] : memref<16x1xf32, #tpu.memory_space<vmem>>, vector<16x1xf32>
      %31 = arith.subf %23, %26 : vector<16x1xf32>
      %32 = math.exp %31 : vector<16x1xf32>
      %33 = arith.mulf %30, %32 : vector<16x1xf32>
      %cst_17 = arith.constant dense<0.000000e+00> : vector<16xf32>
      %34 = vector.multi_reduction <add>, %29, %cst_17 [1] : vector<16x128xf32> to vector<16xf32>
      %35 = vector.shape_cast %34 : vector<16xf32> to vector<16x1xf32>
      %36 = arith.addf %33, %35 : vector<16x1xf32>
      %c0_18 = arith.constant 0 : index
      %c0_19 = arith.constant 0 : index
      %37 = vector.load %arg11[%c0_18, %c0_19] : memref<16x1xf32, #tpu.memory_space<vmem>>, vector<16x1xf32>
      tpu.vector_store %arg11[%c0_18, %c0_19], %36 {strides = array<i32>} : memref<16x1xf32, #tpu.memory_space<vmem>>, vector<16x1xf32>,
      %c0_20 = arith.constant 0 : index
      %c0_21 = arith.constant 0 : index
      %38 = vector.load %arg10[%c0_20, %c0_21] : memref<16x1xf32, #tpu.memory_space<vmem>>, vector<16x1xf32>
      tpu.vector_store %arg10[%c0_20, %c0_21], %26 {strides = array<i32>} : memref<16x1xf32, #tpu.memory_space<vmem>>, vector<16x1xf32>,
    } else {
    }
    %c1_i32 = arith.constant 1 : i32
    %10 = arith.cmpi eq, %arg1, %c1_i32 : i32
    %c0_i32_4 = arith.constant 0 : i32
    %11 = arith.cmpi eq, %arg2, %c0_i32_4 : i32
    %12 = arith.andi %10, %11 : i1
    %13 = arith.extui %12 : i1 to i32
    %c0_i32_5 = arith.constant 0 : i32
    %14 = arith.cmpi ne, %13, %c0_i32_5 : i32
    scf.if %14 {
      %c0 = arith.constant 0 : index
      %c0_8 = arith.constant 0 : index
      %18 = vector.load %arg10[%c0, %c0_8] : memref<16x1xf32, #tpu.memory_space<vmem>>, vector<16x1xf32>
      %c0_9 = arith.constant 0 : index
      %c0_10 = arith.constant 0 : index
      %19 = vector.load %arg11[%c0_9, %c0_10] : memref<16x1xf32, #tpu.memory_space<vmem>>, vector<16x1xf32>
      %20 = math.log %19 : vector<16x1xf32>
      %21 = arith.addf %18, %20 : vector<16x1xf32>
      %c0_11 = arith.constant 0 : index
      %c0_12 = arith.constant 0 : index
      %22 = vector.load %arg11[%c0_11, %c0_12] : memref<16x1xf32, #tpu.memory_space<vmem>>, vector<16x1xf32>
      tpu.vector_store %arg11[%c0_11, %c0_12], %21 {strides = array<i32>} : memref<16x1xf32, #tpu.memory_space<vmem>>, vector<16x1xf32>,
    } else {
    }
    %c1_i32_6 = arith.constant 1 : i32
    %15 = arith.cmpi eq, %arg1, %c1_i32_6 : i32
    %16 = arith.extui %15 : i1 to i32
    %c0_i32_7 = arith.constant 0 : i32
    %17 = arith.cmpi ne, %16, %c0_i32_7 : i32
    scf.if %17 {
      %c0 = arith.constant 0 : index
      %18 = arith.index_cast %1 : i32 to index
      %19 = vector.load %arg9[%c0, %18] : memref<16x128xf32, #tpu.memory_space<vmem>>, vector<16x128xf32>
      %c0_8 = arith.constant 0 : index
      %c0_9 = arith.constant 0 : index
      %20 = vector.load %arg11[%c0_8, %c0_9] : memref<16x1xf32, #tpu.memory_space<vmem>>, vector<16x1xf32>
      %21 = vector.broadcast %20 : vector<16x1xf32> to vector<16x128xf32>
      %22 = arith.subf %19, %21 : vector<16x128xf32>
      %c0_10 = arith.constant 0 : index
      %c0_11 = arith.constant 0 : index
      %23 = vector.load %arg7[%c0_10, %c0_11] : memref<16x128xf32, #tpu.memory_space<vmem>>, vector<16x128xf32>
      tpu.vector_store %arg7[%c0_10, %c0_11], %22 {strides = array<i32>} : memref<16x128xf32, #tpu.memory_space<vmem>>, vector<16x128xf32>,
    } else {
    }
    return
  }
  func.func @transform_0(%arg0: i32, %arg1: i32, %arg2: i32) -> (i32, i32) {
    %c0_i32 = arith.constant 0 : i32
    %c0_i32_0 = arith.constant 0 : i32
    return %arg0, %c0_i32 : i32, i32
  }
  func.func @transform_1(%arg0: i32, %arg1: i32, %arg2: i32) -> (i32, i32) {
    %c0_i32 = arith.constant 0 : i32
    %c0_i32_0 = arith.constant 0 : i32
    %c0_i32_1 = arith.constant 0 : i32
    return %c0_i32, %c0_i32_0 : i32, i32
  }
  func.func @transform_2(%arg0: i32, %arg1: i32, %arg2: i32) -> (i32, i32) {
    %c0_i32 = arith.constant 0 : i32
    %c0_i32_0 = arith.constant 0 : i32
    %c0_i32_1 = arith.constant 0 : i32
    return %c0_i32, %c0_i32_0 : i32, i32
  }
  func.func @transform_3(%arg0: i32, %arg1: i32, %arg2: i32) -> (i32, i32) {
    %c1_i32 = arith.constant 1 : i32
    %0 = arith.subi %c1_i32, %arg1 : i32
    %1 = arith.muli %arg2, %0 : i32
    %c0_i32 = arith.constant 0 : i32
    %2 = arith.muli %c0_i32, %arg1 : i32
    %3 = arith.addi %1, %2 : i32
    %c0_i32_0 = arith.constant 0 : i32
    %c0_i32_1 = arith.constant 0 : i32
    return %c0_i32_0, %3 : i32, i32
  }
  func.func @transform_4(%arg0: i32, %arg1: i32, %arg2: i32) -> (i32, i32) {
    %0 = arith.muli %arg2, %arg1 : i32
    %c0_i32 = arith.constant 0 : i32
    return %arg0, %0 : i32, i32
  }
}

</mosaic_0001>

<llo_original>
// kernel: tpu_custom_call.1
$region0: #{tpu_custom_call.1}
  #allocation0 [shape = 'u32[]', space=smem, size = 0x4, offset = 0x4, fixed_abs, tag = 'smem constant byte address 0x4 - core index']
  #allocation1 [shape = 'u32[72,128]{1,0:T(1,128)}', space=vmem, size = 0x9000, scoped, tag = 'internal scratch']
  #allocation2 [shape = 'f32[16,32]{1,0:T(8,128)}', space=vmem, size = 0x2000, scoped, tag = 'scratch operand']
  #allocation3 [shape = 'f32[16,128]{1,0:T(8,128)}', space=vmem, size = 0x2000, scoped, tag = 'scratch operand']
  #allocation4 [shape = 'f32[16,1]{1,0:T(8,128)}', space=vmem, size = 0x2000, scoped, tag = 'scratch operand']
  #allocation5 [shape = 'f32[16,1]{1,0:T(8,128)}', space=vmem, size = 0x2000, scoped, tag = 'scratch operand']
  %s0 = inlined_call_operand.hbm [shape: f32[16,32], index: 0, kind: input, shape index: {}]
  %s1 = inlined_call_operand.hbm [shape: f32[32,32], index: 1, kind: input, shape index: {}]
  %s2 = inlined_call_operand.vmem [shape: f32[1,32], index: 2, kind: input, shape index: {}]
  %s3 = inlined_call_operand.hbm [shape: f32[32,128], index: 3, kind: input, shape index: {}]
  %s4 = inlined_call_operand.hbm [shape: f32[16,128], index: 4, kind: output, shape index: {}]
  %s5 = sld [smem:[#allocation0]]
  $region77: #{tpu_custom_call.1} parent=0
    _
  %s7 = ssub.s32 1, %s5
  %s8 = scalar_select 0, %s7, %s5
  $region1: #{tpu_custom_call.1} parent=0
    #allocation6 [shape = 'u8[8192]{0}', space=vmem, size = 0x2000, scoped, tag = 'input window, operand 0, single buffered']
    #allocation7 [shape = 's32[2]{0}', space=sflag, size = 0x8, scoped, tag = 'scoped memory for tpu_custom_call.1']
    #allocation8 [shape = 's32[2]{0}', space=sflag, size = 0x8, scoped, tag = 'scoped memory for tpu_custom_call.1']
    #allocation9 [shape = 'u8[16384]{0}', space=vmem, size = 0x4000, scoped, tag = 'input window, operand 1, single buffered']
    #allocation10 [shape = 's32[1]{0}', space=sflag, size = 0x4, scoped, tag = 'scoped memory for tpu_custom_call.1']
    #allocation11 [shape = 'u8[32768]{0}', space=vmem, size = 0x8000, scoped, tag = 'input window, operand 3']
    #allocation12 [shape = 'u8[16384]{0}', space=vmem, size = 0x4000, scoped, tag = 'output window, operand 0']
    %9 = vsyncpa [#allocation7], 0
    %10 = vsyncpa [#allocation10], 0
    %11 = vsyncpa [#allocation8], 0
    %s12 = scalar_lea.sflag [#allocation8], 1
    %13 = vsyncpa %s12, 0
    loop: start=0, step=1, limit=4
    $region2: #{tpu_custom_call.1} parent=1 // loop_pre_header
      _
    $region3: #{tpu_custom_call.1} parent=1 // loop_header
      %s15 = sphi 0, %s19
      %p16 = scmp.ge.s32.totalorder %s15, 4
      %s22 = sphi 0, %s41
      %s23 = sphi 0, %s37
      %s24 = sphi 0, %s33
      %s25 = sphi 0, %s22
      %s26 = sphi 0, %s23
      %s27 = sphi 0, %s24
      %s28 = sphi 0, %s25
      %s29 = sphi 0, %s26
      %s30 = sphi 0, %s27
      %s44 = sphi 0, %s46
      %s47 = sphi 0, %s44
      %s48 = sphi 0, %s47
      %s64 = sphi 0, %s48
      %s68 = sphi 0, %s68
      %s70 = sphi 0, %s68
      %s71 = sphi 0, %s70
      %s85 = sphi 0, %s71
      %s89 = sphi 0, %s89
      %s91 = sphi 0, %s89
      %s92 = sphi 0, %s91
      %s106 = sphi 0, %s92
      %s116 = sphi 0, %s118
      %s119 = sphi 0, %s116
      %s120 = sphi 0, %s119
      %s136 = sphi 0, %s120
      %s146 = sphi 0, %s148
      %s149 = sphi 0, %s146
      %s150 = sphi 0, %s149
      %s166 = sphi 0, %s150
    $region4: #{tpu_custom_call.1} parent=1 // loop_header_branch
      %18 = sbr.rel (%p16) target = $region8
    $region5: #{tpu_custom_call.1} parent=1 // loop_body
      %s20 = ssub.s32 %s15, 1
      %s21 = ssub.s32 %s15, 2
      %s31 = sadd.s32 1, %s24
      %p32 = scmp.ge.s32.totalorder %s31, 1
      %s33 = scalar_select %p32, 0, %s31
      %s34 = sadd.s32 1, %s23
      %s35 = scalar_select %p32, %s34, %s23
      %p36 = scmp.ge.s32.totalorder %s35, 2
      %s37 = scalar_select %p36, 0, %s35
      %s38 = sadd.s32 1, %s22
      %s39 = scalar_select %p36, %s38, %s22
      %p40 = scmp.ge.s32.totalorder %s39, 1
      %s41 = scalar_select %p40, 0, %s39
      %s42 = ssub.s32 %s22, %s41
      %p43 = scmp.eq.s32.totalorder %s42, 0
      %s45 = sadd.s32 %s44, 1
      %s46 = scalar_select %p43, %s44, %s45
      %p49 = pneg %p43
      %p50 = scmp.eq.s32.totalorder %s15, 1
      %p51 = por %p49, %p50
      %p52 = scmp.ne.s32.totalorder %s44, %s47
      %p53 = scmp.eq.s32.totalorder %s15, 0
      %p54 = por %p52, %p53
      %p55 = scmp.ne.s32.totalorder %s44, %s47
      %p56 = scmp.eq.s32.totalorder %s20, 1
      %p57 = por %p55, %p56
      %p58 = scmp.ne.s32.totalorder %s47, %s48
      %p59 = scmp.eq.s32.totalorder %s20, 0
      %p60 = por %p58, %p59
      %p61 = scmp.ne.s32.totalorder %s47, %s48
      %p62 = scmp.eq.s32.totalorder %s21, 1
      %p63 = por %p61, %p62
      %p65 = scmp.ne.s32.totalorder %s48, %s64
      %p66 = scmp.eq.s32.totalorder %s21, 0
      %p67 = por %p65, %p66
      %s69 = sadd.s32 %s68, 1
      %p72 = scmp.eq.s32.totalorder %s15, 1
      %p73 = scmp.ne.s32.totalorder %s68, %s70
      %p74 = scmp.eq.s32.totalorder %s15, 0
      %p75 = por %p73, %p74
      %p76 = scmp.ne.s32.totalorder %s68, %s70
      %p77 = scmp.eq.s32.totalorder %s20, 1
      %p78 = por %p76, %p77
      %p79 = scmp.ne.s32.totalorder %s70, %s71
      %p80 = scmp.eq.s32.totalorder %s20, 0
      %p81 = por %p79, %p80
      %p82 = scmp.ne.s32.totalorder %s70, %s71
      %p83 = scmp.eq.s32.totalorder %s21, 1
      %p84 = por %p82, %p83
      %p86 = scmp.ne.s32.totalorder %s71, %s85
      %p87 = scmp.eq.s32.totalorder %s21, 0
      %p88 = por %p86, %p87
      %s90 = sadd.s32 %s89, 1
      %p93 = scmp.eq.s32.totalorder %s15, 1
      %p94 = scmp.ne.s32.totalorder %s89, %s91
      %p95 = scmp.eq.s32.totalorder %s15, 0
      %p96 = por %p94, %p95
      %p97 = scmp.ne.s32.totalorder %s89, %s91
      %p98 = scmp.eq.s32.totalorder %s20, 1
      %p99 = por %p97, %p98
      %p100 = scmp.ne.s32.totalorder %s91, %s92
      %p101 = scmp.eq.s32.totalorder %s20, 0
      %p102 = por %p100, %p101
      %p103 = scmp.ne.s32.totalorder %s91, %s92
      %p104 = scmp.eq.s32.totalorder %s21, 1
      %p105 = por %p103, %p104
      %p107 = scmp.ne.s32.totalorder %s92, %s106
      %p108 = scmp.eq.s32.totalorder %s21, 0
      %p109 = por %p107, %p108
      %s110 = ssub.s32 1, %s23
      %s111 = smul.u32 %s24, %s110
      %s112 = ssub.s32 1, %s37
      %s113 = smul.u32 %s33, %s112
      %s114 = ssub.s32 %s111, %s113
      %p115 = scmp.eq.s32.totalorder %s114, 0
      %s117 = sadd.s32 %s116, 1
      %s118 = scalar_select %p115, %s116, %s117
      %p121 = pneg %p115
      %p122 = scmp.eq.s32.totalorder %s15, 1
      %p123 = por %p121, %p122
      %p124 = scmp.ne.s32.totalorder %s116, %s119
      %p125 = scmp.eq.s32.totalorder %s15, 0
      %p126 = por %p124, %p125
      %p127 = scmp.ne.s32.totalorder %s116, %s119
      %p128 = scmp.eq.s32.totalorder %s20, 1
      %p129 = por %p127, %p128
      %p130 = scmp.ne.s32.totalorder %s119, %s120
      %p131 = scmp.eq.s32.totalorder %s20, 0
      %p132 = por %p130, %p131
      %p133 = scmp.ne.s32.totalorder %s119, %s120
      %p134 = scmp.eq.s32.totalorder %s21, 1
      %p135 = por %p133, %p134
      %p137 = scmp.ne.s32.totalorder %s120, %s136
      %p138 = scmp.eq.s32.totalorder %s21, 0
      %p139 = por %p137, %p138
      %s140 = smul.u32 %s24, %s23
      %s141 = smul.u32 %s33, %s37
      %s142 = ssub.s32 %s22, %s41
      %s143 = ssub.s32 %s140, %s141
      %s144 = sor.u32 %s142, %s143
      %p145 = scmp.eq.s32.totalorder %s144, 0
      %s147 = sadd.s32 %s146, 1
      %s148 = scalar_select %p145, %s146, %s147
      %p151 = pneg %p145
      %p152 = scmp.eq.s32.totalorder %s15, 1
      %p153 = por %p151, %p152
      %p154 = scmp.ne.s32.totalorder %s146, %s149
      %p155 = scmp.eq.s32.totalorder %s15, 0
      %p156 = por %p154, %p155
      %p157 = scmp.ne.s32.totalorder %s146, %s149
      %p158 = scmp.eq.s32.totalorder %s20, 1
      %p159 = por %p157, %p158
      %p160 = scmp.ne.s32.totalorder %s149, %s150
      %p161 = scmp.eq.s32.totalorder %s20, 0
      %p162 = por %p160, %p161
      %p163 = scmp.ne.s32.totalorder %s149, %s150
      %p164 = scmp.eq.s32.totalorder %s21, 1
      %p165 = por %p163, %p164
      %p167 = scmp.ne.s32.totalorder %s150, %s166
      %p168 = scmp.eq.s32.totalorder %s21, 0
      %p169 = por %p167, %p168
      %p170 = scmp.le.s32.totalorder 1, %s15
      %p171 = scmp.lt.s32.totalorder %s15, 3
      %p172 = pnand %p170, %p171
      %p173 = pneg %p172
      // Predicated region
      $region9: #{tpu_custom_call.1} parent=5 // pred_check
        _
      $region10: #{tpu_custom_call.1} parent=5 // pred_check_branch
        %175 = sbr.rel (%p172) target = $region12
      $region11: #{tpu_custom_call.1} parent=5 // pred_region
        %s176 = ssub.s32 %s15, 1
        // Predicated region
        $region13: #{tpu_custom_call.1} parent=11 // pred_check
          %p177 = pneg %p60
        $region14: #{tpu_custom_call.1} parent=11 // pred_check_branch
          %179 = sbr.rel (%p177) target = $region16
        $region15: #{tpu_custom_call.1} parent=11 // pred_region
          %s180 = smul.u32 2, %s25
          %182 = vsyncadd [#allocation7], 0
          %s183 = smul.addr %s180, 8
          %s184 = scalar_lea.hbm %s0, %s183
          %s185 = sshll.u32 %s184, 4
          %s186 = int_to_ptr.hbm [resolvable:$true] %s185
          %s187 = sshll.u32 [#allocation6], 4
          %s188 = int_to_ptr.vmem [resolvable:$true] %s187
          %193 = dma.hbm_to_vmem [thread:$0]  %s186, 256, %s188, [#allocation7], 128, 128, 8
        $region16: #{tpu_custom_call.1} parent=11 // pred_fallthru
          _
        // Predicated region
        $region17: #{tpu_custom_call.1} parent=11 // pred_check
          %p194 = pneg %p81
        $region18: #{tpu_custom_call.1} parent=11 // pred_check_branch
          %196 = sbr.rel (%p194) target = $region20
        $region19: #{tpu_custom_call.1} parent=11 // pred_region
          %198 = vsyncadd [#allocation10], 0
          %s199 = sshll.u32 %s1, 4
          %s200 = int_to_ptr.hbm [resolvable:$true] %s199
          %s201 = sshll.u32 [#allocation9], 4
          %s202 = int_to_ptr.vmem [resolvable:$true] %s201
          %207 = dma.hbm_to_vmem [thread:$0]  %s200, 512, %s202, [#allocation10], 128, 128, 8
        $region20: #{tpu_custom_call.1} parent=11 // pred_fallthru
          _
        // Predicated region
        $region21: #{tpu_custom_call.1} parent=11 // pred_check
          %p208 = pneg %p102
        $region22: #{tpu_custom_call.1} parent=11 // pred_check_branch
          %210 = sbr.rel (%p208) target = $region24
        $region23: #{tpu_custom_call.1} parent=11 // pred_region
          _
        $region24: #{tpu_custom_call.1} parent=11 // pred_fallthru
          _
      $region12: #{tpu_custom_call.1} parent=5 // pred_fallthru
        _
      %p211 = scmp.lt.s32.totalorder %s15, 2
      // Predicated region
      $region25: #{tpu_custom_call.1} parent=5 // pred_check
        %p212 = pneg %p211
      $region26: #{tpu_custom_call.1} parent=5 // pred_check_branch
        %214 = sbr.rel (%p212) target = $region28
      $region27: #{tpu_custom_call.1} parent=5 // pred_region
        // Predicated region
        $region29: #{tpu_custom_call.1} parent=27 // pred_check
          %p215 = pneg %p126
        $region30: #{tpu_custom_call.1} parent=27 // pred_check_branch
          %217 = sbr.rel (%p215) target = $region32
        $region31: #{tpu_custom_call.1} parent=27 // pred_region
          %s218 = sand.u32 %s15, 1
          %s219 = scalar_lea.sflag [#allocation7], %s218
          %s220 = sand.u32 %s116, 1
          %s221 = smul.addr %s220, 32
          %s222 = scalar_lea.vmem [#allocation11], %s221
          %s223 = ssub.s32 1, %s23
          %s224 = smul.u32 %s24, %s223
          %226 = vsyncadd %s219, 0
          %s227 = smul.addr %s224, 8
          %s228 = scalar_lea.hbm %s3, %s227
          %s229 = sshll.u32 %s228, 4
          %s230 = int_to_ptr.hbm [resolvable:$true] %s229
          %s231 = sshll.u32 %s222, 4
          %s232 = int_to_ptr.vmem [resolvable:$true] %s231
          %237 = dma.hbm_to_vmem [thread:$0]  %s230, 512, %s232, %s219, 128, 128, 8
        $region32: #{tpu_custom_call.1} parent=27 // pred_fallthru
          _
      $region28: #{tpu_custom_call.1} parent=5 // pred_fallthru
        _
      %p238 = scmp.le.s32.totalorder 1, %s15
      %p239 = scmp.lt.s32.totalorder %s15, 3
      %p240 = pnand %p238, %p239
      %p241 = pneg %p240
      // Predicated region
      $region33: #{tpu_custom_call.1} parent=5 // pred_check
        _
      $region34: #{tpu_custom_call.1} parent=5 // pred_check_branch
        %243 = sbr.rel (%p240) target = $region36
      $region35: #{tpu_custom_call.1} parent=5 // pred_region
        %s244 = ssub.s32 %s15, 1
        // Predicated region
        $region37: #{tpu_custom_call.1} parent=35 // pred_check
          %p245 = pneg %p60
        $region38: #{tpu_custom_call.1} parent=35 // pred_check_branch
          %247 = sbr.rel (%p245) target = $region40
        $region39: #{tpu_custom_call.1} parent=35 // pred_region
          %249 = dma.done [#allocation7], 256
        $region40: #{tpu_custom_call.1} parent=35 // pred_fallthru
          _
        // Predicated region
        $region41: #{tpu_custom_call.1} parent=35 // pred_check
          %p250 = pneg %p81
        $region42: #{tpu_custom_call.1} parent=35 // pred_check_branch
          %252 = sbr.rel (%p250) target = $region44
        $region43: #{tpu_custom_call.1} parent=35 // pred_region
          %254 = dma.done [#allocation10], 512
        $region44: #{tpu_custom_call.1} parent=35 // pred_fallthru
          _
        %s255 = sand.u32 %s20, 1
        %s256 = scalar_lea.sflag [#allocation7], %s255
        %s257 = sand.u32 %s119, 1
        %s258 = smul.addr %s257, 32
        %s259 = scalar_lea.vmem [#allocation11], %s258
        // Predicated region
        $region45: #{tpu_custom_call.1} parent=35 // pred_check
          %p260 = pneg %p132
        $region46: #{tpu_custom_call.1} parent=35 // pred_check_branch
          %262 = sbr.rel (%p260) target = $region48
        $region47: #{tpu_custom_call.1} parent=35 // pred_region
          %264 = dma.done %s256, 512
        $region48: #{tpu_custom_call.1} parent=35 // pred_fallthru
          _
        %p265 = pneg %p60
        %p266 = pneg %p57
        %p267 = pneg %p81
        %p268 = pneg %p78
        %p269 = pneg %p102
        %p270 = pneg %p99
        %s271 = sand.u32 %s20, 1
        %s272 = scalar_lea.sflag [#allocation7], %s271
        %s273 = sand.u32 %s119, 1
        %s274 = smul.addr %s273, 32
        %s275 = scalar_lea.vmem [#allocation11], %s274
        %p276 = pneg %p132
        %p277 = pneg %p129
        %p278 = pneg %p162
        %p279 = pneg %p159
        %s280 = sand.u32 %s149, 1
        %s281 = scalar_lea.sflag [#allocation8], %s280
        %s282 = sand.u32 %s149, 1
        %s283 = smul.addr %s282, 16
        %s284 = scalar_lea.vmem [#allocation12], %s283
        %s285 = smul.u32 2, %s25
        %s286 = ssub.s32 1, %s26
        %s287 = smul.u32 %s27, %s286
        %s288 = smul.u32 %s27, %s26
        %s289 = smul.u32 2, %s25
        %s290 = smul.u32 %s27, 128
        %p291 = scmp.eq.s32.totalorder %s26, 0
        %p292 = scmp.eq.s32.totalorder %s27, 0
        %p293 = pnand %p291, %p292
        %p294 = pneg %p293
        // Predicated region
        $region49: #{tpu_custom_call.1} parent=35 // pred_check
          _
        $region50: #{tpu_custom_call.1} parent=35 // pred_check_branch
          %296 = sbr.rel (%p293) target = $region52
        $region51: #{tpu_custom_call.1} parent=35 // pred_region
          %v297 = vld [vmem:[#allocation6] sm:$0xff]
          %v298 = vld [vmem:[#allocation6 + $0x8] sm:$0xff]
          %v299 = vld [vmem:[#allocation9] sm:$0xff]
          %v300 = vld [vmem:[#allocation9 + $0x8] sm:$0xff]
          %v301 = vld [vmem:[#allocation9 + $0x10] sm:$0xff]
          %v302 = vld [vmem:[#allocation9 + $0x18] sm:$0xff]
          %v303 = vld [vmem:[%s2] sm:$0x1]
          %v305 = vperm.slane %v303, 0
          %vm307 = vcmask 261120
          %v309 = vsel %vm307, %v297, 0
          %v312 = vsel %vm307, %v298, 0
          %314 = vmatpush.msra.mxu0 0.0
          %315 = vmatpush.msra.mxu0 0.0
          %316 = vmatpush.msra.mxu0 0.0
          %317 = vmatpush.msra.mxu0 0.0
          %318 = vmatpush.msra.mxu0 0.0
          %319 = vmatpush.msra.mxu0 0.0
          %320 = vmatpush.msra.mxu0 0.0
          %321 = vmatpush.msra.mxu0 0.0
          %322 = vmatpush.msra.mxu0 0.0
          %323 = vmatpush.msra.mxu0 0.0
          %324 = vmatpush.msra.mxu0 0.0
          %325 = vmatpush.msra.mxu0 0.0
          %326 = vmatpush.msra.mxu0 %v302
          %327 = vmatpush.msra.mxu0 %v301
          %328 = vmatpush.msra.mxu0 %v300
          %329 = vmatpush.msra.mxu0 %v299
          %330 = vmatmul.f32.gmra.mxu0 %v309
          %v331 = vpop.f32.mrf.mxu0
          %v332 = vadd.f32 %v305, %v331
          %333 = vmatmul.f32.gmra.mxu0 %v312
          %v334 = vpop.f32.mrf.mxu0
          %v335 = vadd.f32 %v305, %v334
          %336 = vdwg.mxu0
          %v337 = vmax.f32 %v332, 0.0
          %v338 = vmax.f32 %v335, 0.0
          %339 = vst.msk [vmem:[#allocation2] sm:$0xff] %vm307, %v337
          %340 = vst.msk [vmem:[#allocation2 + $0x8] sm:$0xff] %vm307, %v338
          %vm341 = vcmask 7168
          %342 = vst.msk [vmem:[#allocation4] sm:$0xff] %vm341, -inf
          %343 = vst.msk [vmem:[#allocation4 + $0x8] sm:$0xff] %vm341, -inf
          %344 = vst.msk [vmem:[#allocation5] sm:$0xff] %vm341, 0.0
          %345 = vst.msk [vmem:[#allocation5 + $0x8] sm:$0xff] %vm341, 0.0
        $region52: #{tpu_custom_call.1} parent=35 // pred_fallthru
          _
        // Predicated region
        $region53: #{tpu_custom_call.1} parent=35 // pred_check
          %p346 = pneg %p291
        $region54: #{tpu_custom_call.1} parent=35 // pred_check_branch
          %348 = sbr.rel (%p346) target = $region56
        $region55: #{tpu_custom_call.1} parent=35 // pred_region
          %v349 = vld [vmem:[#allocation2] sm:$0xff]
          %v350 = vld [vmem:[#allocation2 + $0x8] sm:$0xff]
          %v351 = vld [vmem:[%s259] sm:$0xff]
          %v352 = vld [vmem:[%s259 + $0x8] sm:$0xff]
          %v353 = vld [vmem:[%s259 + $0x10] sm:$0xff]
          %v354 = vld [vmem:[%s259 + $0x18] sm:$0xff]
          %vm355 = vcmask 261120
          %v357 = vsel %vm355, %v349, 0
          %v360 = vsel %vm355, %v350, 0
          %362 = vmatpush.msra.mxu0 0.0
          %363 = vmatpush.msra.mxu0 0.0
          %364 = vmatpush.msra.mxu0 0.0
          %365 = vmatpush.msra.mxu0 0.0
          %366 = vmatpush.msra.mxu0 0.0
          %367 = vmatpush.msra.mxu0 0.0
          %368 = vmatpush.msra.mxu0 0.0
          %369 = vmatpush.msra.mxu0 0.0
          %370 = vmatpush.msra.mxu0 0.0
          %371 = vmatpush.msra.mxu0 0.0
          %372 = vmatpush.msra.mxu0 0.0
          %373 = vmatpush.msra.mxu0 0.0
          %374 = vmatpush.msra.mxu0 %v354
          %375 = vmatpush.msra.mxu0 %v353
          %376 = vmatpush.msra.mxu0 %v352
          %377 = vmatpush.msra.mxu0 %v351
          %378 = vmatmul.f32.gmra.mxu0 %v357
          %v379 = vpop.f32.mrf.mxu0
          %v380 = vadd.f32 0.0, %v379
          %381 = vmatmul.f32.gmra.mxu0 %v360
          %v382 = vpop.f32.mrf.mxu0
          %v383 = vadd.f32 0.0, %v382
          %384 = vdwg.mxu0
          %s385 = sshra.s32 %s290, 7
          %s386 = sand.u32 %s290, 127
          %s387 = scalar_lea.vmem [#allocation3], %s385
          %388 = vst [vmem:[%s387] sm:$0xff] %v380
          %389 = vst [vmem:[%s387 + $0x8] sm:$0xff] %v383
          %v390 = vld [vmem:[#allocation4] sm:$0xff]
          %v391 = vld [vmem:[#allocation4 + $0x8] sm:$0xff]
          %392 = vmax.xlane.f32.xlu0 %v380
          %v393 = vpop.xlane.xlu0 %392
          %394 = vmax.xlane.f32.xlu0 %v383
          %v395 = vpop.xlane.xlu0 %394
          %v396 = vmax.f32 %v390, %v393
          %v397 = vmax.f32 %v391, %v395
          %399 = vset.pattern.permute.xlu0 0
          %400 = vperm.xlu0 %399, %v396
          %v401 = vpop.permute.xlu0 %400
          %404 = vset.pattern.permute.xlu0 0
          %405 = vperm.xlu0 %404, %v397
          %v406 = vpop.permute.xlu0 %405
          %v408 = vsub.f32 %v380, %v401
          %v409 = vsub.f32 %v383, %v406
          %v410 = vmul.f32 %v408, 1.442695
          %v411 = vpow.pop %v410
          %v412 = vmul.f32 %v409, 1.442695
          %v413 = vpow.pop %v412
          %v414 = vld [vmem:[#allocation5] sm:$0xff]
          %v415 = vld [vmem:[#allocation5 + $0x8] sm:$0xff]
          %v416 = vsub.f32 %v390, %v396
          %v417 = vsub.f32 %v391, %v397
          %v418 = vmul.f32 %v416, 1.442695
          %v419 = vpow.pop %v418
          %v420 = vmul.f32 %v417, 1.442695
          %v421 = vpow.pop %v420
          %v422 = vmul.f32 %v414, %v419
          %v423 = vmul.f32 %v415, %v421
          %424 = vadd.xlane.f32.xlu0 %v411
          %v425 = vpop.xlane.xlu0 %424
          %426 = vadd.xlane.f32.xlu0 %v413
          %v427 = vpop.xlane.xlu0 %426
          %v428 = vadd.f32 %v422, %v425
          %v429 = vadd.f32 %v423, %v427
          %vm430 = vcmask 7168
          %431 = vst.msk [vmem:[#allocation5] sm:$0xff] %vm430, %v428
          %432 = vst.msk [vmem:[#allocation5 + $0x8] sm:$0xff] %vm430, %v429
          %433 = vst.msk [vmem:[#allocation4] sm:$0xff] %vm430, %v396
          %434 = vst.msk [vmem:[#allocation4 + $0x8] sm:$0xff] %vm430, %v397
        $region56: #{tpu_custom_call.1} parent=35 // pred_fallthru
          _
        %p435 = scmp.eq.s32.totalorder %s26, 1
        %p436 = pnand %p435, %p292
        %p437 = pneg %p436
        // Predicated region
        $region57: #{tpu_custom_call.1} parent=35 // pred_check
          _
        $region58: #{tpu_custom_call.1} parent=35 // pred_check_branch
          %439 = sbr.rel (%p436) target = $region60
        $region59: #{tpu_custom_call.1} parent=35 // pred_region
          %v440 = vld [vmem:[#allocation4] sm:$0xff]
          %v441 = vld [vmem:[#allocation4 + $0x8] sm:$0xff]
          %v442 = vld [vmem:[#allocation5] sm:$0xff]
          %v443 = vld [vmem:[#allocation5 + $0x8] sm:$0xff]
          %v444 = vlog2.pop %v442
          %v445 = vmul.f32 %v444, 0.6931472
          %v446 = vlog2.pop %v443
          %v447 = vmul.f32 %v446, 0.6931472
          %v448 = vadd.f32 %v440, %v445
          %v449 = vadd.f32 %v441, %v447
          %vm450 = vcmask 7168
          %451 = vst.msk [vmem:[#allocation5] sm:$0xff] %vm450, %v448
          %452 = vst.msk [vmem:[#allocation5 + $0x8] sm:$0xff] %vm450, %v449
        $region60: #{tpu_custom_call.1} parent=35 // pred_fallthru
          _
        // Predicated region
        $region61: #{tpu_custom_call.1} parent=35 // pred_check
          %p453 = pneg %p435
        $region62: #{tpu_custom_call.1} parent=35 // pred_check_branch
          %455 = sbr.rel (%p453) target = $region64
        $region63: #{tpu_custom_call.1} parent=35 // pred_region
          %s456 = sshra.s32 %s290, 7
          %s457 = sand.u32 %s290, 127
          %s458 = scalar_lea.vmem [#allocation3], %s456
          %v459 = vld [vmem:[%s458] sm:$0xff]
          %v460 = vld [vmem:[%s458 + $0x8] sm:$0xff]
          %v461 = vld [vmem:[#allocation5] sm:$0xff]
          %v462 = vld [vmem:[#allocation5 + $0x8] sm:$0xff]
          %464 = vset.pattern.permute.xlu0 0
          %465 = vperm.xlu0 %464, %v461
          %v466 = vpop.permute.xlu0 %465
          %469 = vset.pattern.permute.xlu0 0
          %470 = vperm.xlu0 %469, %v462
          %v471 = vpop.permute.xlu0 %470
          %v473 = vsub.f32 %v459, %v466
          %v474 = vsub.f32 %v460, %v471
          %475 = vst [vmem:[%s284] sm:$0xff] %v473
          %476 = vst [vmem:[%s284 + $0x8] sm:$0xff] %v474
        $region64: #{tpu_custom_call.1} parent=35 // pred_fallthru
          _
        %s477 = sand.u32 %s149, 1
        %s478 = scalar_lea.sflag [#allocation8], %s477
        %s479 = sand.u32 %s149, 1
        %s480 = smul.addr %s479, 16
        %s481 = scalar_lea.vmem [#allocation12], %s480
        // Predicated region
        $region65: #{tpu_custom_call.1} parent=35 // pred_check
          %p482 = pneg %p159
        $region66: #{tpu_custom_call.1} parent=35 // pred_check_branch
          %484 = sbr.rel (%p482) target = $region68
        $region67: #{tpu_custom_call.1} parent=35 // pred_region
          %s485 = smul.u32 %s27, %s26
          %s486 = smul.u32 2, %s25
          %488 = vsyncadd %s478, 0
          %s489 = sadd.s32 %s485, %s486
          %s490 = smul.addr %s489, 8
          %s491 = scalar_lea.hbm %s4, %s490
          %s492 = sshll.u32 %s481, 4
          %s493 = int_to_ptr.vmem [resolvable:$true] %s492
          %s494 = sshll.u32 %s491, 4
          %s495 = int_to_ptr.hbm [resolvable:$true] %s494
          %500 = dma.vmem_to_hbm [thread:$0]  %s493, 256, %s495, %s478, 128, 128, 8
        $region68: #{tpu_custom_call.1} parent=35 // pred_fallthru
          _
      $region36: #{tpu_custom_call.1} parent=5 // pred_fallthru
        _
      %p501 = scmp.le.s32.totalorder 2, %s15
      // Predicated region
      $region69: #{tpu_custom_call.1} parent=5 // pred_check
        %p502 = pneg %p501
      $region70: #{tpu_custom_call.1} parent=5 // pred_check_branch
        %504 = sbr.rel (%p502) target = $region72
      $region71: #{tpu_custom_call.1} parent=5 // pred_region
        %s505 = ssub.s32 %s15, 2
        // Predicated region
        $region73: #{tpu_custom_call.1} parent=71 // pred_check
          %p506 = pneg %p165
        $region74: #{tpu_custom_call.1} parent=71 // pred_check_branch
          %508 = sbr.rel (%p506) target = $region76
        $region75: #{tpu_custom_call.1} parent=71 // pred_region
          %s509 = sand.u32 %s150, 1
          %s510 = scalar_lea.sflag [#allocation8], %s509
          %s511 = sand.u32 %s150, 1
          %s512 = smul.addr %s511, 16
          %s513 = scalar_lea.vmem [#allocation12], %s512
          %515 = dma.done %s510, 256
        $region76: #{tpu_custom_call.1} parent=71 // pred_fallthru
          _
      $region72: #{tpu_custom_call.1} parent=5 // pred_fallthru
        _
    $region6: #{tpu_custom_call.1} parent=1 // loop_footer
      %s19 = sadd.s32 1, %s15
    $region7: #{tpu_custom_call.1} parent=1 // loop_footer_branch
      %14 = sbr.rel target = $region3
    $region8: #{tpu_custom_call.1} parent=1 // loop_exit
      _
    %516 = vsyncpa [#allocation7], 1
    %s517 = scalar_lea.sflag [#allocation7], 1
    %518 = vsyncpa %s517, 1
    %519 = vsyncpa [#allocation10], 1
    %520 = vsyncpa [#allocation8], 1
    %s521 = scalar_lea.sflag [#allocation8], 1
    %522 = vsyncpa %s521, 1

</llo_original>
